<compile_context>
chip_gen: v7x
topology: tpu7x:2x2x1
jax: 0.10.0
libtpu: 0.0.40
codegen_flags: <defaults>
</compile_context>

<pallas_src>
import math

import jax
import jax.numpy as jnp
from jax.experimental import pallas as pl
from jax.experimental.pallas import tpu as pltpu


def _round_up(x, m):
    return ((x + m - 1) // m) * m


def _cdiv(a, b):
    return (a + b - 1) // b


def _vmem_capacity_bytes():
    """Physical VMEM per TensorCore; conservative fallback if unqueryable."""
    try:
        info_fn = getattr(pltpu, "get_tpu_info", None)
        if info_fn is not None:
            cap = getattr(info_fn(), "vmem_capacity_bytes", None)
            if cap:
                return int(cap)
    except Exception:
        pass
    return 64 << 20  # v7x per-TC size; safe lower bound for v5e/v6e as well


# ---------------------------------------------------------------------------
# Kernels
# ---------------------------------------------------------------------------

def _mm_single_k_kernel(a_ref, b_ref, o_ref):
    """grid=(m,n): whole K reduction in one tile -> no accumulator scratch."""
    o_ref[...] = jnp.dot(a_ref[...].astype(jnp.bfloat16), b_ref[...],
                         preferred_element_type=jnp.float32).astype(o_ref.dtype)


def _mm_multi_k_kernel(a_ref, b_ref, o_ref, acc_ref):
    """grid=(m,n,k): K-reduction over last grid axis, f32 VMEM accumulator."""
    k = pl.program_id(2)

    @pl.when(k == 0)
    def _init():
        acc_ref[...] = jnp.zeros_like(acc_ref)

    acc_ref[...] += jnp.dot(a_ref[...].astype(jnp.bfloat16), b_ref[...],
                            preferred_element_type=jnp.float32)

    @pl.when(k == pl.num_programs(2) - 1)
    def _store():
        o_ref[...] = acc_ref[...].astype(o_ref.dtype)


def _make_mm_resident_b_kernel(tk):
    """grid=(m,k): B fully resident in VMEM (DMA'd once), sliced per K step."""
    def kernel(a_ref, b_ref, o_ref, acc_ref):
        k = pl.program_id(1)

        @pl.when(k == 0)
        def _init():
            acc_ref[...] = jnp.zeros_like(acc_ref)

        off = pl.multiple_of(k * tk, 128)
        b_stripe = b_ref[pl.ds(off, tk), :]
        acc_ref[...] += jnp.dot(a_ref[...].astype(jnp.bfloat16), b_stripe,
                                preferred_element_type=jnp.float32)

        @pl.when(k == pl.num_programs(1) - 1)
        def _store():
            o_ref[...] = acc_ref[...].astype(o_ref.dtype)

    return kernel


def _fused_kernel(a_ref, x_ref, w_ref, o_ref, s_ref):
    """out_tile = (sum_k sgs_tile[k] @ x_stripe[k]) @ W, W resident in VMEM."""
    k = pl.program_id(1)

    @pl.when(k == 0)
    def _init():
        s_ref[...] = jnp.zeros_like(s_ref)

    s_ref[...] += jnp.dot(a_ref[...].astype(jnp.bfloat16), x_ref[...],
                          preferred_element_type=jnp.float32)

    @pl.when(k == pl.num_programs(1) - 1)
    def _store():
        o_ref[...] = jnp.dot(s_ref[...].astype(jnp.bfloat16), w_ref[...],
                             preferred_element_type=jnp.float32).astype(o_ref.dtype)


# ---------------------------------------------------------------------------
# Wrappers
# ---------------------------------------------------------------------------

def _pallas_matmul(a, b, *, out_dtype, tm_cap=1024, tk_cap=4096, tn_cap=1024):
    """out = a @ b with f32 accumulation.  A streamed in its original dtype."""
    M, K = a.shape
    K2, N = b.shape
    assert K == K2
    a_bpe = a.dtype.itemsize
    out_bpe = jnp.dtype(out_dtype).itemsize

    phys = _vmem_capacity_bytes()
    budget = max(16 << 20, int(phys * 0.45))

    # Megacore (v7x): make sure the "parallel" M axis has >= 2 row tiles.
    if M > 128:
        tm_cap = min(tm_cap, max(128, _round_up(_cdiv(M, 2), 128)))

    tm = min(_round_up(M, 128), tm_cap)
    tk = min(_round_up(K, 128), tk_cap)
    tn = min(_round_up(N, 128), tn_cap)

    def usage(tm_, tk_, tn_):
        return (2 * tm_ * tk_ * a_bpe      # A tiles, original dtype, dbl-buffered
                + 2 * tk_ * tn_ * 2        # B stripes (bf16)
                + 2 * tm_ * tn_ * out_bpe  # output tiles
                + tm_ * tn_ * 4)           # f32 accumulator

    def shrink(v):
        return max(128, ((v // 2) // 128) * 128)

    while usage(tm, tk, tn) > budget and tk > 128:
        tk = shrink(tk)
    while usage(tm, tk, tn) > budget and tm > 128:
        tm = shrink(tm)
    while usage(tm, tk, tn) > budget and tn > 128:
        tn = shrink(tn)

    single_k = tk >= K
    if single_k:
        tk = K           # full-K tile: no padding, no reduction grid axis
        k_pad = K
    else:
        k_pad = _round_up(K, tk)

    n_pad = _round_up(N, tn)
    m_tiles = _cdiv(M, tm)
    n_tiles = _cdiv(n_pad, tn)
    k_tiles = _cdiv(k_pad, tk)

    # A: pad along K only when the reduction axis is tiled and ragged.
    a_in = a if k_pad == K else jnp.pad(a, ((0, 0), (0, k_pad - K)))
    # B: the small operand -> pad to (k_pad, n_pad) and cast once to bf16.
    b_in = b
    if k_pad != K or n_pad != N:
        b_in = jnp.pad(b_in, ((0, k_pad - K), (0, n_pad - N)))
    b_in = b_in.astype(jnp.bfloat16)

    cost = pl.CostEstimate(
        flops=2 * M * K * n_pad,
        transcendentals=0,
        bytes_accessed=M * K * a_bpe + k_pad * n_pad * 2 + M * n_pad * out_bpe)

    # Can B be kept fully resident in VMEM while K is tiled?
    def usage_resident(tm_, tk_):
        return (2 * tm_ * tk_ * a_bpe + 2 * k_pad * n_pad * 2
                + 2 * tm_ * n_pad * out_bpe + tm_ * n_pad * 4)

    b_resident = ((not single_k) and n_tiles == 1
                  and usage_resident(tm, tk) <= budget)

    if single_k:
        use = 2 * tm * K * a_bpe + 2 * K * tn * 2 + 2 * tm * tn * out_bpe
        vmem_limit = int(min(use + (12 << 20), int(phys * 0.75)))
        out_p = pl.pallas_call(
            _mm_single_k_kernel,
            out_shape=jax.ShapeDtypeStruct((M, n_pad), out_dtype),
            grid_spec=pltpu.PrefetchScalarGridSpec(
                num_scalar_prefetch=0,
                grid=(m_tiles, n_tiles),
                in_specs=[
                    pl.BlockSpec((tm, K), lambda i, j: (i, 0)),
                    pl.BlockSpec((K, tn), lambda i, j: (0, j)),
                ],
                out_specs=pl.BlockSpec((tm, tn), lambda i, j: (i, j)),
            ),
            compiler_params=pltpu.CompilerParams(
                dimension_semantics=("parallel", "parallel"),
                vmem_limit_bytes=vmem_limit),
            cost_estimate=cost,
        )(a_in, b_in)
    elif b_resident:
        use = usage_resident(tm, tk)
        vmem_limit = int(min(use + (12 << 20), int(phys * 0.75)))
        out_p = pl.pallas_call(
            _make_mm_resident_b_kernel(tk),
            out_shape=jax.ShapeDtypeStruct((M, n_pad), out_dtype),
            grid_spec=pltpu.PrefetchScalarGridSpec(
                num_scalar_prefetch=0,
                grid=(m_tiles, k_tiles),
                in_specs=[
                    pl.BlockSpec((tm, tk), lambda i, k: (i, k)),
                    pl.BlockSpec((k_pad, n_pad), lambda i, k: (0, 0)),
                ],
                out_specs=pl.BlockSpec((tm, n_pad), lambda i, k: (i, 0)),
                scratch_shapes=[pltpu.VMEM((tm, n_pad), jnp.float32)],
            ),
            compiler_params=pltpu.CompilerParams(
                dimension_semantics=("parallel", "arbitrary"),
                vmem_limit_bytes=vmem_limit),
            cost_estimate=cost,
        )(a_in, b_in)
    else:
        use = usage(tm, tk, tn)
        vmem_limit = int(min(use + (12 << 20), int(phys * 0.75)))
        out_p = pl.pallas_call(
            _mm_multi_k_kernel,
            out_shape=jax.ShapeDtypeStruct((M, n_pad), out_dtype),
            grid_spec=pltpu.PrefetchScalarGridSpec(
                num_scalar_prefetch=0,
                grid=(m_tiles, n_tiles, k_tiles),
                in_specs=[
                    pl.BlockSpec((tm, tk), lambda i, j, k: (i, k)),
                    pl.BlockSpec((tk, tn), lambda i, j, k: (k, j)),
                ],
                out_specs=pl.BlockSpec((tm, tn), lambda i, j, k: (i, j)),
                scratch_shapes=[pltpu.VMEM((tm, tn), jnp.float32)],
            ),
            compiler_params=pltpu.CompilerParams(
                dimension_semantics=("parallel", "parallel", "arbitrary"),
                vmem_limit_bytes=vmem_limit),
            cost_estimate=cost,
        )(a_in, b_in)

    return out_p[:, :N]


def _fused_two_matmul(sgs, x, W, *, out_dtype):
    """out = (sgs @ x) @ W in one kernel; W resident, intermediate in VMEM."""
    M, K = sgs.shape
    K2, mdim = x.shape
    mdim2, vdim = W.shape
    assert K == K2 and mdim == mdim2
    a_bpe = sgs.dtype.itemsize
    out_bpe = jnp.dtype(out_dtype).itemsize

    md_pad = _round_up(mdim, 128)
    vd_pad = _round_up(vdim, 128)
    phys = _vmem_capacity_bytes()
    budget = max(16 << 20, int(phys * 0.45))

    tm_cap, tk_cap = 1024, 4096
    if M > 128:
        tm_cap = min(tm_cap, max(128, _round_up(_cdiv(M, 2), 128)))
    tm = min(_round_up(M, 128), tm_cap)
    tk = min(_round_up(K, 128), tk_cap)

    def usage(tm_, tk_):
        return (2 * tm_ * tk_ * a_bpe       # sgs tiles, original dtype
                + 2 * tk_ * md_pad * 2      # x stripes (bf16)
                + 2 * md_pad * vd_pad * 2   # resident W (bf16)
                + 2 * tm_ * vd_pad * out_bpe
                + tm_ * md_pad * 4)         # f32 intermediate accumulator

    def shrink(v):
        return max(128, ((v // 2) // 128) * 128)

    while usage(tm, tk) > budget and tk > 128:
        tk = shrink(tk)
    while usage(tm, tk) > budget and tm > 128:
        tm = shrink(tm)
    if usage(tm, tk) > budget:
        return None                          # caller falls back to chained matmuls

    if tk >= K:
        tk = K
        k_pad = K
    else:
        k_pad = _round_up(K, tk)

    m_tiles = _cdiv(M, tm)
    k_tiles = _cdiv(k_pad, tk)

    a_in = sgs if k_pad == K else jnp.pad(sgs, ((0, 0), (0, k_pad - K)))
    x_in = x
    if k_pad != K or md_pad != mdim:
        x_in = jnp.pad(x_in, ((0, k_pad - K), (0, md_pad - mdim)))
    x_in = x_in.astype(jnp.bfloat16)
    w_in = W
    if md_pad != mdim or vd_pad != vdim:
        w_in = jnp.pad(w_in, ((0, md_pad - mdim), (0, vd_pad - vdim)))
    w_in = w_in.astype(jnp.bfloat16)

    use = usage(tm, tk)
    vmem_limit = int(min(use + (12 << 20), int(phys * 0.75)))
    cost = pl.CostEstimate(
        flops=2 * M * K * md_pad + 2 * M * md_pad * vd_pad,
        transcendentals=0,
        bytes_accessed=(M * K * a_bpe + k_pad * md_pad * 2
                        + md_pad * vd_pad * 2 + M * vd_pad * out_bpe))

    out_p = pl.pallas_call(
        _fused_kernel,
        out_shape=jax.ShapeDtypeStruct((M, vd_pad), out_dtype),
        grid_spec=pltpu.PrefetchScalarGridSpec(
            num_scalar_prefetch=0,
            grid=(m_tiles, k_tiles),
            in_specs=[
                pl.BlockSpec((tm, tk), lambda i, k: (i, k)),
                pl.BlockSpec((tk, md_pad), lambda i, k: (k, 0)),
                pl.BlockSpec((md_pad, vd_pad), lambda i, k: (0, 0)),
            ],
            out_specs=pl.BlockSpec((tm, vd_pad), lambda i, k: (i, 0)),
            scratch_shapes=[pltpu.VMEM((tm, md_pad), jnp.float32)],
        ),
        compiler_params=pltpu.CompilerParams(
            dimension_semantics=("parallel", "arbitrary"),
            vmem_limit_bytes=vmem_limit),
        cost_estimate=cost,
    )(a_in, x_in, w_in)

    return out_p[:, :vdim]


def hgnn_sg_attn_multiplicative(x, sgs, W):
    """Pallas equivalent of HGNN_sg_attn_multiplicative.forward.

    Returns (out, W) exactly like the PyTorch module: out = (sgs @ x) @ W.
    """
    M, N = sgs.shape
    N2, mdim = x.shape
    mdim2, vdim = W.shape
    assert N == N2 and mdim == mdim2
    out_dtype = x.dtype

    if vdim <= mdim:
        # Reassociate: (sgs @ x) @ W == sgs @ (x @ W).  x @ W is small; compute
        # it once in full f32 in the wrapper, then stream one matmul over sgs.
        xw = jnp.dot(x.astype(jnp.float32), W.astype(jnp.float32),
                     precision=jax.lax.Precision.HIGHEST)
        out = _pallas_matmul(sgs, xw, out_dtype=out_dtype)
    else:
        # vdim > mdim: fused single-kernel (sgs @ x) @ W with resident W.
        out = _fused_two_matmul(sgs, x, W, out_dtype=out_dtype)
        if out is None:
            # Pathologically large vdim: fall back to two streamed matmuls.
            t = _pallas_matmul(sgs, x, out_dtype=jnp.float32)
            out = _pallas_matmul(t, W, out_dtype=out_dtype)
    return out, W


def xavier_uniform(key, shape, dtype=jnp.float32):
    fan_in, fan_out = shape[0], shape[1]
    bound = math.sqrt(6.0 / (fan_in + fan_out))
    return jax.random.uniform(key, shape, dtype=dtype, minval=-bound, maxval=bound)


if __name__ == "__main__":
    key = jax.random.PRNGKey(0)
    k1, k2, k3, k4, k5, k6 = jax.random.split(key, 6)

    # --- Test 1: dominant reassociated path (vdim <= mdim), single-K kernel ---
    M, N, mdim, vdim = 256, 384, 64, 32
    x = jax.random.normal(k1, (N, mdim), dtype=jnp.float32)
    sgs = jax.random.normal(k2, (M, N), dtype=jnp.float32)
    W = xavier_uniform(k3, (mdim, vdim))
    out, W_out = hgnn_sg_attn_multiplicative(x, sgs, W)
    out = jax.block_until_ready(out)
    ref = (sgs @ x) @ W
    assert out.shape == (M, vdim) and out.dtype == x.dtype
    rel = float(jnp.max(jnp.abs(out - ref)) / (jnp.max(jnp.abs(ref)) + 1e-6))
    assert rel < 2e-2, f"test1 relative error too large: {rel}"
    assert jnp.array_equal(W_out, W)

    # --- Test 2: vdim > mdim -> fused kernel, ragged M and non-128 K ---
    M2, N2, mdim2, vdim2 = 200, 160, 32, 64
    x2 = jax.random.normal(k4, (N2, mdim2), dtype=jnp.float32)
    sgs2 = jax.random.normal(k5, (M2, N2), dtype=jnp.float32)
    W2 = xavier_uniform(k6, (mdim2, vdim2))
    out2, _ = hgnn_sg_attn_multiplicative(x2, sgs2, W2)
    out2 = jax.block_until_ready(out2)
    ref2 = (sgs2 @ x2) @ W2
    assert out2.shape == (M2, vdim2)
    rel2 = float(jnp.max(jnp.abs(out2 - ref2)) / (jnp.max(jnp.abs(ref2)) + 1e-6))
    assert rel2 < 2e-2, f"test2 relative error too large: {rel2}"

    # --- Test 3: resident-B multi-K reduction kernel (forced small tk) ---
    out3 = _pallas_matmul(sgs, (x @ W).astype(jnp.float32),
                          out_dtype=jnp.float32, tk_cap=128)
    out3 = jax.block_until_ready(out3)
    rel3 = float(jnp.max(jnp.abs(out3 - ref)) / (jnp.max(jnp.abs(ref)) + 1e-6))
    assert rel3 < 2e-2, f"test3 relative error too large: {rel3}"

    # --- Test 4: general (m, n, k) kernel with an N grid axis ---
    A4 = jax.random.normal(k1, (192, 320), dtype=jnp.float32)
    B4 = jax.random.normal(k2, (320, 200), dtype=jnp.float32)
    out4 = _pallas_matmul(A4, B4, out_dtype=jnp.float32, tk_cap=128, tn_cap=128)
    out4 = jax.block_until_ready(out4)
    ref4 = A4 @ B4
    rel4 = float(jnp.max(jnp.abs(out4 - ref4)) / (jnp.max(jnp.abs(ref4)) + 1e-6))
    assert rel4 < 2e-2, f"test4 relative error too large: {rel4}"

    print("KERNEL_OK")
</pallas_src>

<mosaic_0001>
module attributes {stable_mosaic.version = 11 : i64} {
  func.func @_mm_single_k_kernel(%arg0: i32, %arg1: i32, %arg2: memref<128x384xf32, #tpu.memory_space<vmem>>, %arg3: memref<384x128xbf16, #tpu.memory_space<vmem>>, %arg4: memref<128x128xf32, #tpu.memory_space<vmem>>) attributes {dimension_semantics = [#tpu.dimension_semantics<parallel>, #tpu.dimension_semantics<parallel>], iteration_bounds = array<i64: 2, 1>, scalar_prefetch = 0 : i64, scratch_operands = 0 : i64, tpu.core_type = #tpu.core_type<tc>, window_params = [{transform_indices = @transform_0, window_bounds = array<i64: 128, 384>}, {transform_indices = @transform_1, window_bounds = array<i64: 384, 128>}, {transform_indices = @transform_2, window_bounds = array<i64: 128, 128>}]} {
    %c0 = arith.constant 0 : index
    %c0_0 = arith.constant 0 : index
    %0 = vector.load %arg2[%c0, %c0_0] : memref<128x384xf32, #tpu.memory_space<vmem>>, vector<128x384xf32>
    %1 = arith.truncf %0 : vector<128x384xf32> to vector<128x384xbf16>
    %c0_1 = arith.constant 0 : index
    %c0_2 = arith.constant 0 : index
    %2 = vector.load %arg3[%c0_1, %c0_2] : memref<384x128xbf16, #tpu.memory_space<vmem>>, vector<384x128xbf16>
    %cst = arith.constant dense<0.000000e+00> : vector<128x128xf32>
    %3 = tpu.matmul %1, %2, %cst {dimension_numbers = #tpu.dot_dimension_numbers<[1], [0], [0], [1], [0, 0, 1, 1], [], []>} : vector<128x384xbf16>, vector<384x128xbf16>, vector<128x128xf32> -> vector<128x128xf32>
    %c0_3 = arith.constant 0 : index
    %c0_4 = arith.constant 0 : index
    %4 = vector.load %arg4[%c0_3, %c0_4] : memref<128x128xf32, #tpu.memory_space<vmem>>, vector<128x128xf32>
    tpu.vector_store %arg4[%c0_3, %c0_4], %3 {strides = array<i32>} : memref<128x128xf32, #tpu.memory_space<vmem>>, vector<128x128xf32>,
    return
  }
  func.func @transform_0(%arg0: i32, %arg1: i32) -> (i32, i32) {
    %c0_i32 = arith.constant 0 : i32
    %c0_i32_0 = arith.constant 0 : i32
    return %arg0, %c0_i32 : i32, i32
  }
  func.func @transform_1(%arg0: i32, %arg1: i32) -> (i32, i32) {
    %c0_i32 = arith.constant 0 : i32
    %c0_i32_0 = arith.constant 0 : i32
    return %c0_i32, %arg1 : i32, i32
  }
  func.func @transform_2(%arg0: i32, %arg1: i32) -> (i32, i32) {
    %c0_i32 = arith.constant 0 : i32
    return %arg0, %arg1 : i32, i32
  }
}

</mosaic_0001>

<llo_original>
// kernel: tpu_custom_call.1
$region0: #{tpu_custom_call.1}
  #allocation0 [shape = 'u32[]', space=smem, size = 0x4, offset = 0x4, fixed_abs, tag = 'smem constant byte address 0x4 - core index']
  #allocation1 [shape = 'u32[144,128]{1,0:T(1,128)}', space=vmem, size = 0x12000, scoped, tag = 'internal scratch']
  %s0 = inlined_call_operand.hbm [shape: f32[256,384], index: 0, kind: input, shape index: {}]
  %s1 = inlined_call_operand.hbm [shape: bf16[384,128], index: 1, kind: input, shape index: {}]
  %s2 = inlined_call_operand.hbm [shape: f32[256,128], index: 2, kind: output, shape index: {}]
  %s3 = sld [smem:[#allocation0]]
  $region49: #{tpu_custom_call.1} parent=0
    _
  %s5 = ssub.s32 1, %s3
  %s6 = scalar_select 0, %s5, %s3
  $region1: #{tpu_custom_call.1} parent=0
    #allocation2 [shape = 'u8[393216]{0}', space=vmem, size = 0x60000, scoped, tag = 'input window, operand 0']
    #allocation3 [shape = 's32[2]{0}', space=sflag, size = 0x8, scoped, tag = 'scoped memory for tpu_custom_call.1']
    #allocation4 [shape = 's32[2]{0}', space=sflag, size = 0x8, scoped, tag = 'scoped memory for tpu_custom_call.1']
    #allocation5 [shape = 'u8[98304]{0}', space=vmem, size = 0x18000, scoped, tag = 'input window, operand 1, single buffered']
    #allocation6 [shape = 's32[1]{0}', space=sflag, size = 0x4, scoped, tag = 'scoped memory for tpu_custom_call.1']
    #allocation7 [shape = 'u8[131072]{0}', space=vmem, size = 0x20000, scoped, tag = 'output window, operand 0']
    %7 = vsyncpa [#allocation3], 0
    %s8 = scalar_lea.sflag [#allocation3], 1
    %9 = vsyncpa %s8, 0
    %10 = vsyncpa [#allocation6], 0
    %11 = vsyncpa [#allocation4], 0
    %s12 = scalar_lea.sflag [#allocation4], 1
    %13 = vsyncpa %s12, 0
    loop: start=0, step=1, limit=4
    $region2: #{tpu_custom_call.1} parent=1 // loop_pre_header
      _
    $region3: #{tpu_custom_call.1} parent=1 // loop_header
      %s15 = sphi 0, %s19
      %p16 = scmp.ge.s32.totalorder %s15, 4
      %s22 = sphi 0, %s34
      %s23 = sphi 0, %s30
      %s24 = sphi 0, %s22
      %s25 = sphi 0, %s23
      %s26 = sphi 0, %s24
      %s27 = sphi 0, %s25
      %s37 = sphi 0, %s39
      %s40 = sphi 0, %s37
      %s41 = sphi 0, %s40
      %s57 = sphi 0, %s41
      %s63 = sphi 0, %s65
      %s66 = sphi 0, %s63
      %s67 = sphi 0, %s66
      %s83 = sphi 0, %s67
      %s91 = sphi 0, %s93
      %s94 = sphi 0, %s91
      %s95 = sphi 0, %s94
      %s111 = sphi 0, %s95
    $region4: #{tpu_custom_call.1} parent=1 // loop_header_branch
      %18 = sbr.rel (%p16) target = $region8
    $region5: #{tpu_custom_call.1} parent=1 // loop_body
      %s20 = ssub.s32 %s15, 1
      %s21 = ssub.s32 %s15, 2
      %s28 = sadd.s32 1, %s23
      %p29 = scmp.ge.s32.totalorder %s28, 1
      %s30 = scalar_select %p29, 0, %s28
      %s31 = sadd.s32 1, %s22
      %s32 = scalar_select %p29, %s31, %s22
      %p33 = scmp.ge.s32.totalorder %s32, 2
      %s34 = scalar_select %p33, 0, %s32
      %s35 = ssub.s32 %s22, %s34
      %p36 = scmp.eq.s32.totalorder %s35, 0
      %s38 = sadd.s32 %s37, 1
      %s39 = scalar_select %p36, %s37, %s38
      %p42 = pneg %p36
      %p43 = scmp.eq.s32.totalorder %s15, 1
      %p44 = por %p42, %p43
      %p45 = scmp.ne.s32.totalorder %s37, %s40
      %p46 = scmp.eq.s32.totalorder %s15, 0
      %p47 = por %p45, %p46
      %p48 = scmp.ne.s32.totalorder %s37, %s40
      %p49 = scmp.eq.s32.totalorder %s20, 1
      %p50 = por %p48, %p49
      %p51 = scmp.ne.s32.totalorder %s40, %s41
      %p52 = scmp.eq.s32.totalorder %s20, 0
      %p53 = por %p51, %p52
      %p54 = scmp.ne.s32.totalorder %s40, %s41
      %p55 = scmp.eq.s32.totalorder %s21, 1
      %p56 = por %p54, %p55
      %p58 = scmp.ne.s32.totalorder %s41, %s57
      %p59 = scmp.eq.s32.totalorder %s21, 0
      %p60 = por %p58, %p59
      %s61 = ssub.s32 %s23, %s30
      %p62 = scmp.eq.s32.totalorder %s61, 0
      %s64 = sadd.s32 %s63, 1
      %s65 = scalar_select %p62, %s63, %s64
      %p68 = pneg %p62
      %p69 = scmp.eq.s32.totalorder %s15, 1
      %p70 = por %p68, %p69
      %p71 = scmp.ne.s32.totalorder %s63, %s66
      %p72 = scmp.eq.s32.totalorder %s15, 0
      %p73 = por %p71, %p72
      %p74 = scmp.ne.s32.totalorder %s63, %s66
      %p75 = scmp.eq.s32.totalorder %s20, 1
      %p76 = por %p74, %p75
      %p77 = scmp.ne.s32.totalorder %s66, %s67
      %p78 = scmp.eq.s32.totalorder %s20, 0
      %p79 = por %p77, %p78
      %p80 = scmp.ne.s32.totalorder %s66, %s67
      %p81 = scmp.eq.s32.totalorder %s21, 1
      %p82 = por %p80, %p81
      %p84 = scmp.ne.s32.totalorder %s67, %s83
      %p85 = scmp.eq.s32.totalorder %s21, 0
      %p86 = por %p84, %p85
      %s87 = ssub.s32 %s22, %s34
      %s88 = ssub.s32 %s23, %s30
      %s89 = sor.u32 %s87, %s88
      %p90 = scmp.eq.s32.totalorder %s89, 0
      %s92 = sadd.s32 %s91, 1
      %s93 = scalar_select %p90, %s91, %s92
      %p96 = pneg %p90
      %p97 = scmp.eq.s32.totalorder %s15, 1
      %p98 = por %p96, %p97
      %p99 = scmp.ne.s32.totalorder %s91, %s94
      %p100 = scmp.eq.s32.totalorder %s15, 0
      %p101 = por %p99, %p100
      %p102 = scmp.ne.s32.totalorder %s91, %s94
      %p103 = scmp.eq.s32.totalorder %s20, 1
      %p104 = por %p102, %p103
      %p105 = scmp.ne.s32.totalorder %s94, %s95
      %p106 = scmp.eq.s32.totalorder %s20, 0
      %p107 = por %p105, %p106
      %p108 = scmp.ne.s32.totalorder %s94, %s95
      %p109 = scmp.eq.s32.totalorder %s21, 1
      %p110 = por %p108, %p109
      %p112 = scmp.ne.s32.totalorder %s95, %s111
      %p113 = scmp.eq.s32.totalorder %s21, 0
      %p114 = por %p112, %p113
      %p115 = scmp.le.s32.totalorder 1, %s15
      %p116 = scmp.lt.s32.totalorder %s15, 3
      %p117 = pnand %p115, %p116
      %p118 = pneg %p117
      // Predicated region
      $region9: #{tpu_custom_call.1} parent=5 // pred_check
        _
      $region10: #{tpu_custom_call.1} parent=5 // pred_check_branch
        %120 = sbr.rel (%p117) target = $region12
      $region11: #{tpu_custom_call.1} parent=5 // pred_region
        %s121 = ssub.s32 %s15, 1
        // Predicated region
        $region13: #{tpu_custom_call.1} parent=11 // pred_check
          %p122 = pneg %p79
        $region14: #{tpu_custom_call.1} parent=11 // pred_check_branch
          %124 = sbr.rel (%p122) target = $region16
        $region15: #{tpu_custom_call.1} parent=11 // pred_region
          %s126 = ssub.s32 3072, 3072
          %127 = vsyncadd [#allocation6], %s126
          %s128 = smul.addr %s25, 64
          %s129 = scalar_lea.hbm %s1, %s128
          %s130 = sshll.u32 [#allocation5], 4
          %s131 = int_to_ptr.vmem [resolvable:$true] %s130
          %136 = dma.hbm_to_vmem [thread:$0]  %s129, 3072, %s131, [#allocation6], 64, 64, 4
        $region16: #{tpu_custom_call.1} parent=11 // pred_fallthru
          _
      $region12: #{tpu_custom_call.1} parent=5 // pred_fallthru
        _
      %p137 = scmp.lt.s32.totalorder %s15, 2
      // Predicated region
      $region17: #{tpu_custom_call.1} parent=5 // pred_check
        %p138 = pneg %p137
      $region18: #{tpu_custom_call.1} parent=5 // pred_check_branch
        %140 = sbr.rel (%p138) target = $region20
      $region19: #{tpu_custom_call.1} parent=5 // pred_region
        // Predicated region
        $region21: #{tpu_custom_call.1} parent=19 // pred_check
          %p141 = pneg %p47
        $region22: #{tpu_custom_call.1} parent=19 // pred_check_branch
          %143 = sbr.rel (%p141) target = $region24
        $region23: #{tpu_custom_call.1} parent=19 // pred_region
          %s144 = sand.u32 %s37, 1
          %s145 = scalar_lea.sflag [#allocation3], %s144
          %s146 = sand.u32 %s37, 1
          %s147 = smul.addr %s146, 384
          %s148 = scalar_lea.vmem [#allocation2], %s147
          %s149 = smul.u32 16, %s22
          %s151 = ssub.s32 6144, 6144
          %152 = vsyncadd %s145, %s151
          %s153 = smul.addr %s149, 3
          %s154 = smul.addr %s153, 128
          %s155 = scalar_lea.hbm %s0, %s154
          %s156 = sshll.u32 %s148, 4
          %s157 = int_to_ptr.vmem [resolvable:$true] %s156
          %162 = dma.hbm_to_vmem [thread:$0]  %s155, 6144, %s157, %s145, 384, 384, 24
        $region24: #{tpu_custom_call.1} parent=19 // pred_fallthru
          _
      $region20: #{tpu_custom_call.1} parent=5 // pred_fallthru
        _
      %p163 = scmp.le.s32.totalorder 1, %s15
      %p164 = scmp.lt.s32.totalorder %s15, 3
      %p165 = pnand %p163, %p164
      %p166 = pneg %p165
      // Predicated region
      $region25: #{tpu_custom_call.1} parent=5 // pred_check
        _
      $region26: #{tpu_custom_call.1} parent=5 // pred_check_branch
        %168 = sbr.rel (%p165) target = $region28
      $region27: #{tpu_custom_call.1} parent=5 // pred_region
        %s169 = ssub.s32 %s15, 1
        %s170 = sand.u32 %s40, 1
        %s171 = scalar_lea.sflag [#allocation3], %s170
        %s172 = sand.u32 %s40, 1
        %s173 = smul.addr %s172, 384
        %s174 = scalar_lea.vmem [#allocation2], %s173
        // Predicated region
        $region29: #{tpu_custom_call.1} parent=27 // pred_check
          %p175 = pneg %p53
        $region30: #{tpu_custom_call.1} parent=27 // pred_check_branch
          %177 = sbr.rel (%p175) target = $region32
        $region31: #{tpu_custom_call.1} parent=27 // pred_region
          %178 = dma.done %s171, 6144
        $region32: #{tpu_custom_call.1} parent=27 // pred_fallthru
          _
        // Predicated region
        $region33: #{tpu_custom_call.1} parent=27 // pred_check
          %p179 = pneg %p79
        $region34: #{tpu_custom_call.1} parent=27 // pred_check_branch
          %181 = sbr.rel (%p179) target = $region36
        $region35: #{tpu_custom_call.1} parent=27 // pred_region
          %182 = dma.done [#allocation6], 3072
        $region36: #{tpu_custom_call.1} parent=27 // pred_fallthru
          _
        %s183 = sand.u32 %s40, 1
        %s184 = scalar_lea.sflag [#allocation3], %s183
        %s185 = sand.u32 %s40, 1
        %s186 = smul.addr %s185, 384
        %s187 = scalar_lea.vmem [#allocation2], %s186
        %p188 = pneg %p53
        %p189 = pneg %p50
        %p190 = pneg %p79
        %p191 = pneg %p76
        %p192 = pneg %p107
        %p193 = pneg %p104
        %s194 = sand.u32 %s94, 1
        %s195 = scalar_lea.sflag [#allocation4], %s194
        %s196 = sand.u32 %s94, 1
        %s197 = smul.addr %s196, 128
        %s198 = scalar_lea.vmem [#allocation7], %s197
        %s199 = smul.u32 16, %s24
        %s200 = smul.u32 16, %s24
        %v202 = vld [vmem:[%s174] sm:$0xff]
        %v203 = vld [vmem:[%s174 + $0x8] sm:$0xff]
        %v204 = vld [vmem:[%s174 + $0x10] sm:$0xff]
        %v205 = vld [vmem:[%s174 + $0x18] sm:$0xff]
        %v206 = vld [vmem:[%s174 + $0x20] sm:$0xff]
        %v207 = vld [vmem:[%s174 + $0x28] sm:$0xff]
        %v208 = vld [vmem:[%s174 + $0x30] sm:$0xff]
        %v209 = vld [vmem:[%s174 + $0x38] sm:$0xff]
        %v210 = vld [vmem:[%s174 + $0x40] sm:$0xff]
        %v211 = vld [vmem:[%s174 + $0x48] sm:$0xff]
        %v212 = vld [vmem:[%s174 + $0x50] sm:$0xff]
        %v213 = vld [vmem:[%s174 + $0x58] sm:$0xff]
        %v214 = vld [vmem:[%s174 + $0x60] sm:$0xff]
        %v215 = vld [vmem:[%s174 + $0x68] sm:$0xff]
        %v216 = vld [vmem:[%s174 + $0x70] sm:$0xff]
        %v217 = vld [vmem:[%s174 + $0x78] sm:$0xff]
        %v218 = vld [vmem:[%s174 + $0x80] sm:$0xff]
        %v219 = vld [vmem:[%s174 + $0x88] sm:$0xff]
        %v220 = vld [vmem:[%s174 + $0x90] sm:$0xff]
        %v221 = vld [vmem:[%s174 + $0x98] sm:$0xff]
        %v222 = vld [vmem:[%s174 + $0xa0] sm:$0xff]
        %v223 = vld [vmem:[%s174 + $0xa8] sm:$0xff]
        %v224 = vld [vmem:[%s174 + $0xb0] sm:$0xff]
        %v225 = vld [vmem:[%s174 + $0xb8] sm:$0xff]
        %v226 = vld [vmem:[%s174 + $0xc0] sm:$0xff]
        %v227 = vld [vmem:[%s174 + $0xc8] sm:$0xff]
        %v228 = vld [vmem:[%s174 + $0xd0] sm:$0xff]
        %v229 = vld [vmem:[%s174 + $0xd8] sm:$0xff]
        %v230 = vld [vmem:[%s174 + $0xe0] sm:$0xff]
        %v231 = vld [vmem:[%s174 + $0xe8] sm:$0xff]
        %v232 = vld [vmem:[%s174 + $0xf0] sm:$0xff]
        %v233 = vld [vmem:[%s174 + $0xf8] sm:$0xff]
        %v234 = vld [vmem:[%s174 + $0x100] sm:$0xff]
        %v235 = vld [vmem:[%s174 + $0x108] sm:$0xff]
        %v236 = vld [vmem:[%s174 + $0x110] sm:$0xff]
        %v237 = vld [vmem:[%s174 + $0x118] sm:$0xff]
        %v238 = vld [vmem:[%s174 + $0x120] sm:$0xff]
        %v239 = vld [vmem:[%s174 + $0x128] sm:$0xff]
        %v240 = vld [vmem:[%s174 + $0x130] sm:$0xff]
        %v241 = vld [vmem:[%s174 + $0x138] sm:$0xff]
        %v242 = vld [vmem:[%s174 + $0x140] sm:$0xff]
        %v243 = vld [vmem:[%s174 + $0x148] sm:$0xff]
        %v244 = vld [vmem:[%s174 + $0x150] sm:$0xff]
        %v245 = vld [vmem:[%s174 + $0x158] sm:$0xff]
        %v246 = vld [vmem:[%s174 + $0x160] sm:$0xff]
        %v247 = vld [vmem:[%s174 + $0x168] sm:$0xff]
        %v248 = vld [vmem:[%s174 + $0x170] sm:$0xff]
        %v249 = vld [vmem:[%s174 + $0x178] sm:$0xff]
        %v250 = vpack.c.bf16 %v205, %v202
        %v251 = vpack.c.bf16 %v206, %v203
        %v252 = vpack.c.bf16 %v207, %v204
        %v253 = vpack.c.bf16 %v211, %v208
        %v254 = vpack.c.bf16 %v212, %v209
        %v255 = vpack.c.bf16 %v213, %v210
        %v256 = vpack.c.bf16 %v217, %v214
        %v257 = vpack.c.bf16 %v218, %v215
        %v258 = vpack.c.bf16 %v219, %v216
        %v259 = vpack.c.bf16 %v223, %v220
        %v260 = vpack.c.bf16 %v224, %v221
        %v261 = vpack.c.bf16 %v225, %v222
        %v262 = vpack.c.bf16 %v229, %v226
        %v263 = vpack.c.bf16 %v230, %v227
        %v264 = vpack.c.bf16 %v231, %v228
        %v265 = vpack.c.bf16 %v235, %v232
        %v266 = vpack.c.bf16 %v236, %v233
        %v267 = vpack.c.bf16 %v237, %v234
        %v268 = vpack.c.bf16 %v241, %v238
        %v269 = vpack.c.bf16 %v242, %v239
        %v270 = vpack.c.bf16 %v243, %v240
        %v271 = vpack.c.bf16 %v247, %v244
        %v272 = vpack.c.bf16 %v248, %v245
        %v273 = vpack.c.bf16 %v249, %v246
        %v274 = vld [vmem:[#allocation5] sm:$0xf]
        %v275 = vld [vmem:[#allocation5 + $0x4] sm:$0xf]
        %v276 = vld [vmem:[#allocation5 + $0x8] sm:$0xf]
        %v277 = vld [vmem:[#allocation5 + $0xc] sm:$0xf]
        %v278 = vld [vmem:[#allocation5 + $0x10] sm:$0xf]
        %v279 = vld [vmem:[#allocation5 + $0x14] sm:$0xf]
        %v280 = vld [vmem:[#allocation5 + $0x18] sm:$0xf]
        %v281 = vld [vmem:[#allocation5 + $0x1c] sm:$0xf]
        %v282 = vld [vmem:[#allocation5 + $0x20] sm:$0xf]
        %v283 = vld [vmem:[#allocation5 + $0x24] sm:$0xf]
        %v284 = vld [vmem:[#allocation5 + $0x28] sm:$0xf]
        %v285 = vld [vmem:[#allocation5 + $0x2c] sm:$0xf]
        %v286 = vld [vmem:[#allocation5 + $0x30] sm:$0xf]
        %v287 = vld [vmem:[#allocation5 + $0x34] sm:$0xf]
        %v288 = vld [vmem:[#allocation5 + $0x38] sm:$0xf]
        %v289 = vld [vmem:[#allocation5 + $0x3c] sm:$0xf]
        %v290 = vld [vmem:[#allocation5 + $0x40] sm:$0xf]
        %v291 = vld [vmem:[#allocation5 + $0x44] sm:$0xf]
        %v292 = vld [vmem:[#allocation5 + $0x48] sm:$0xf]
        %v293 = vld [vmem:[#allocation5 + $0x4c] sm:$0xf]
        %v294 = vld [vmem:[#allocation5 + $0x50] sm:$0xf]
        %v295 = vld [vmem:[#allocation5 + $0x54] sm:$0xf]
        %v296 = vld [vmem:[#allocation5 + $0x58] sm:$0xf]
        %v297 = vld [vmem:[#allocation5 + $0x5c] sm:$0xf]
        %v298 = vld [vmem:[#allocation5 + $0x60] sm:$0xf]
        %v299 = vld [vmem:[#allocation5 + $0x64] sm:$0xf]
        %v300 = vld [vmem:[#allocation5 + $0x68] sm:$0xf]
        %v301 = vld [vmem:[#allocation5 + $0x6c] sm:$0xf]
        %v302 = vld [vmem:[#allocation5 + $0x70] sm:$0xf]
        %v303 = vld [vmem:[#allocation5 + $0x74] sm:$0xf]
        %v304 = vld [vmem:[#allocation5 + $0x78] sm:$0xf]
        %v305 = vld [vmem:[#allocation5 + $0x7c] sm:$0xf]
        %v306 = vld [vmem:[#allocation5 + $0x80] sm:$0xf]
        %v307 = vld [vmem:[#allocation5 + $0x84] sm:$0xf]
        %v308 = vld [vmem:[#allocation5 + $0x88] sm:$0xf]
        %v309 = vld [vmem:[#allocation5 + $0x8c] sm:$0xf]
        %v310 = vld [vmem:[#allocation5 + $0x90] sm:$0xf]
        %v311 = vld [vmem:[#allocation5 + $0x94] sm:$0xf]
        %v312 = vld [vmem:[#allocation5 + $0x98] sm:$0xf]
        %v313 = vld [vmem:[#allocation5 + $0x9c] sm:$0xf]
        %v314 = vld [vmem:[#allocation5 + $0xa0] sm:$0xf]
        %v315 = vld [vmem:[#allocation5 + $0xa4] sm:$0xf]
        %v316 = vld [vmem:[#allocation5 + $0xa8] sm:$0xf]
        %v317 = vld [vmem:[#allocation5 + $0xac] sm:$0xf]
        %v318 = vld [vmem:[#allocation5 + $0xb0] sm:$0xf]
        %v319 = vld [vmem:[#allocation5 + $0xb4] sm:$0xf]
        %v320 = vld [vmem:[#allocation5 + $0xb8] sm:$0xf]
        %v321 = vld [vmem:[#allocation5 + $0xbc] sm:$0xf]
        %v370 = vunpack.c.l.b16 %v274
        %v371 = vunpack.c.l.b16 %v275
        %v372 = vunpack.c.l.b16 %v276
        %v373 = vunpack.c.l.b16 %v277
        %v374 = vunpack.c.l.b16 %v278
        %v375 = vunpack.c.l.b16 %v279
        %v376 = vunpack.c.l.b16 %v280
        %v377 = vunpack.c.l.b16 %v281
        %v378 = vunpack.c.l.b16 %v282
        %v379 = vunpack.c.l.b16 %v283
        %v380 = vunpack.c.l.b16 %v284
        %v381 = vunpack.c.l.b16 %v285
        %v382 = vunpack.c.l.b16 %v286
        %v383 = vunpack.c.l.b16 %v287
        %v384 = vunpack.c.l.b16 %v288
        %v385 = vunpack.c.l.b16 %v289
        %v386 = vunpack.c.l.b16 %v290
        %v387 = vunpack.c.l.b16 %v291
        %v388 = vunpack.c.l.b16 %v292
        %v389 = vunpack.c.l.b16 %v293
        %v390 = vunpack.c.l.b16 %v294
        %v391 = vunpack.c.l.b16 %v295
        %v392 = vunpack.c.l.b16 %v296
        %v393 = vunpack.c.l.b16 %v297
        %v394 = vunpack.c.l.b16 %v298
        %v395 = vunpack.c.l.b16 %v299
        %v396 = vunpack.c.l.b16 %v300
        %v397 = vunpack.c.l.b16 %v301
        %v398 = vunpack.c.l.b16 %v302
        %v399 = vunpack.c.l.b16 %v303
        %v400 = vunpack.c.l.b16 %v304
        %v401 = vunpack.c.l.b16 %v305
        %v402 = vunpack.c.l.b16 %v306
        %v403 = vunpack.c.l.b16 %v307
        %v404 = vunpack.c.l.b16 %v308
        %v405 = vunpack.c.l.b16 %v309
        %v406 = vunpack.c.l.b16 %v310
        %v407 = vunpack.c.l.b16 %v311
        %v408 = vunpack.c.l.b16 %v312
        %v409 = vunpack.c.l.b16 %v313
        %v410 = vunpack.c.l.b16 %v314
        %v411 = vunpack.c.l.b16 %v315
        %v412 = vunpack.c.l.b16 %v316
        %v413 = vunpack.c.l.b16 %v317
        %v414 = vunpack.c.l.b16 %v318
        %v415 = vunpack.c.l.b16 %v319
        %v416 = vunpack.c.l.b16 %v320
        %v417 = vunpack.c.l.b16 %v321
        %v418 = vpack.c.b16 %v371, %v370
        %v419 = vpack.c.b16 %v373, %v372
        %v420 = vpack.c.b16 %v375, %v374
        %v421 = vpack.c.b16 %v377, %v376
        %v422 = vpack.c.b16 %v379, %v378
        %v423 = vpack.c.b16 %v381, %v380
        %v424 = vpack.c.b16 %v383, %v382
        %v425 = vpack.c.b16 %v385, %v384
        %v426 = vpack.c.b16 %v387, %v386
        %v427 = vpack.c.b16 %v389, %v388
        %v428 = vpack.c.b16 %v391, %v390
        %v429 = vpack.c.b16 %v393, %v392
        %v430 = vpack.c.b16 %v395, %v394
        %v431 = vpack.c.b16 %v397, %v396
        %v432 = vpack.c.b16 %v399, %v398
        %v433 = vpack.c.b16 %v401, %v400
        %v434 = vpack.c.b16 %v403, %v402
        %v435 = vpack.c.b16 %v405, %v404
        %v436 = vpack.c.b16 %v407, %v406
        %v437 = vpack.c.b16 %v409, %v408
        %v438 = vpack.c.b16 %v411, %v410
        %v439 = vpack.c.b16 %v413, %v412
        %v440 = vpack.c.b16 %v415, %v414
        %v441 = vpack.c.b16 %v417, %v416
        %466 = vmatprep.subr.bf16.mxu0 0
        %467 = vmatpush1.bf16.msra.mxu0 %v418
        %468 = vmatprep.subr.bf16.mxu0 0
        %469 = vmatpush1.bf16.msra.mxu0 %v419
        %470 = vmatprep.subr.bf16.mxu0 0
        %471 = vmatpush1.bf16.msra.mxu0 %v420
        %472 = vmatprep.subr.bf16.mxu0 0
        %473 = vmatpush1.bf16.msra.mxu0 %v421
        %474 = vmatprep.subr.bf16.mxu0 0
        %475 = vmatpush1.bf16.msra.mxu0 %v422
        %476 = vmatprep.subr.bf16.mxu0 0
        %477 = vmatpush1.bf16.msra.mxu0 %v423
        %478 = vmatprep.subr.bf16.mxu0 0
        %479 = vmatpush1.bf16.msra.mxu0 %v424
        %480 = vmatprep.subr.bf16.mxu0 0
        %481 = vmatpush1.bf16.msra.mxu0 %v425
        %482 = vmatprep.subr.bf16.mxu0 0
        %483 = vmatpush1.bf16.msra.mxu0 %v426
        %484 = vmatprep.subr.bf16.mxu0 0
        %485 = vmatpush1.bf16.msra.mxu0 %v427
        %486 = vmatprep.subr.bf16.mxu0 0
        %487 = vmatpush1.bf16.msra.mxu0 %v428
        %488 = vmatprep.subr.bf16.mxu0 0
        %489 = vmatpush1.bf16.msra.mxu0 %v429
        %490 = vmatprep.subr.bf16.mxu0 0
        %491 = vmatpush1.bf16.msra.mxu0 %v430
        %492 = vmatprep.subr.bf16.mxu0 0
        %493 = vmatpush1.bf16.msra.mxu0 %v431
        %494 = vmatprep.subr.bf16.mxu0 0
        %495 = vmatpush1.bf16.msra.mxu0 %v432
        %496 = vmatprep.subr.bf16.mxu0 0
        %497 = vmatpush1.bf16.msra.mxu0 %v433
        %498 = vmatprep.mubr.bf16.mxu0 %v251
        %499 = vmatmul.mubr.bf16.gmra.mrb[0].mxu0 %v250
        %v500 = vpop.f32.mrb[0].mxu0
        %v501 = vadd.f32 0.0, %v500
        %v502 = vpop.f32.mrb[0].mxu0
        %v503 = vpop.f32.mrb[0].mxu0
        %v504 = vadd.f32 0.0, %v503
        %v505 = vpop.f32.mrb[0].mxu0
        %506 = vmatprep.mubr.bf16.mxu0 %v254
        %507 = vmatmul.mubr.bf16.gmra.mrb[0].mxu0 %v253
        %v508 = vpop.f32.mrb[0].mxu0
        %v509 = vadd.f32 0.0, %v508
        %v510 = vpop.f32.mrb[0].mxu0
        %v511 = vpop.f32.mrb[0].mxu0
        %v512 = vadd.f32 0.0, %v511
        %v513 = vpop.f32.mrb[0].mxu0
        %514 = vmatprep.mubr.bf16.mxu0 %v257
        %515 = vmatmul.mubr.bf16.gmra.mrb[0].mxu0 %v256
        %v516 = vpop.f32.mrb[0].mxu0
        %v517 = vadd.f32 0.0, %v516
        %v518 = vpop.f32.mrb[0].mxu0
        %v519 = vpop.f32.mrb[0].mxu0
        %v520 = vadd.f32 0.0, %v519
        %v521 = vpop.f32.mrb[0].mxu0
        %522 = vmatprep.mubr.bf16.mxu0 %v260
        %523 = vmatmul.mubr.bf16.gmra.mrb[0].mxu0 %v259
        %v524 = vpop.f32.mrb[0].mxu0
        %v525 = vadd.f32 0.0, %v524
        %v526 = vpop.f32.mrb[0].mxu0
        %v527 = vpop.f32.mrb[0].mxu0
        %v528 = vadd.f32 0.0, %v527
        %v529 = vpop.f32.mrb[0].mxu0
        %530 = vmatprep.mubr.bf16.mxu0 %v263
        %531 = vmatmul.mubr.bf16.gmra.mrb[0].mxu0 %v262
        %v532 = vpop.f32.mrb[0].mxu0
        %v533 = vadd.f32 0.0, %v532
        %v534 = vpop.f32.mrb[0].mxu0
        %v535 = vpop.f32.mrb[0].mxu0
        %v536 = vadd.f32 0.0, %v535
        %v537 = vpop.f32.mrb[0].mxu0
        %538 = vmatprep.mubr.bf16.mxu0 %v266
        %539 = vmatmul.mubr.bf16.gmra.mrb[0].mxu0 %v265
        %v540 = vpop.f32.mrb[0].mxu0
        %v541 = vadd.f32 0.0, %v540
        %v542 = vpop.f32.mrb[0].mxu0
        %v543 = vpop.f32.mrb[0].mxu0
        %v544 = vadd.f32 0.0, %v543
        %v545 = vpop.f32.mrb[0].mxu0
        %546 = vmatprep.mubr.bf16.mxu0 %v269
        %547 = vmatmul.mubr.bf16.gmra.mrb[0].mxu0 %v268
        %v548 = vpop.f32.mrb[0].mxu0
        %v549 = vadd.f32 0.0, %v548
        %v550 = vpop.f32.mrb[0].mxu0
        %v551 = vpop.f32.mrb[0].mxu0
        %v552 = vadd.f32 0.0, %v551
        %v553 = vpop.f32.mrb[0].mxu0
        %554 = vmatprep.mubr.bf16.mxu0 %v272
        %555 = vmatmul.mubr.bf16.gmra.mrb[0].mxu0 %v271
        %v556 = vpop.f32.mrb[0].mxu0
        %v557 = vadd.f32 0.0, %v556
        %v558 = vpop.f32.mrb[0].mxu0
        %v559 = vpop.f32.mrb[0].mxu0
        %v560 = vadd.f32 0.0, %v559
        %v561 = vpop.f32.mrb[0].mxu0
        %562 = vdwg.mxu0
        %563 = vmatprep.subr.bf16.mxu0 0
        %564 = vmatpush1.bf16.msra.mxu0 %v434
        %565 = vmatprep.subr.bf16.mxu0 0
        %566 = vmatpush1.bf16.msra.mxu0 %v435
        %567 = vmatprep.subr.bf16.mxu0 0
        %568 = vmatpush1.bf16.msra.mxu0 %v436
        %569 = vmatprep.subr.bf16.mxu0 0
        %570 = vmatpush1.bf16.msra.mxu0 %v437
        %571 = vmatprep.subr.bf16.mxu0 0
        %572 = vmatpush1.bf16.msra.mxu0 %v438
        %573 = vmatprep.subr.bf16.mxu0 0
        %574 = vmatpush1.bf16.msra.mxu0 %v439
        %575 = vmatprep.subr.bf16.mxu0 0
        %576 = vmatpush1.bf16.msra.mxu0 %v440
        %577 = vmatprep.subr.bf16.mxu0 0
        %578 = vmatpush1.bf16.msra.mxu0 %v441
        %579 = vmatprep.subr.bf16.mxu0 0
        %580 = vmatpush1.bf16.msra.mxu0 0
        %581 = vmatprep.subr.bf16.mxu0 0
        %582 = vmatpush1.bf16.msra.mxu0 0
        %583 = vmatprep.subr.bf16.mxu0 0
        %584 = vmatpush1.bf16.msra.mxu0 0
        %585 = vmatprep.subr.bf16.mxu0 0
        %586 = vmatpush1.bf16.msra.mxu0 0
        %587 = vmatprep.subr.bf16.mxu0 0
        %588 = vmatpush1.bf16.msra.mxu0 0
        %589 = vmatprep.subr.bf16.mxu0 0
        %590 = vmatpush1.bf16.msra.mxu0 0
        %591 = vmatprep.subr.bf16.mxu0 0
        %592 = vmatpush1.bf16.msra.mxu0 0
        %593 = vmatprep.subr.bf16.mxu0 0
        %594 = vmatpush1.bf16.msra.mxu0 0
        %595 = vmatprep.mubr.bf16.mxu0 0
        %596 = vmatmul.mubr.bf16.gmra.mrb[0].mxu0 %v252
        %v597 = vpop.f32.mrb[0].mxu0
        %v598 = vadd.f32 %v501, %v597
        %v599 = vpop.f32.mrb[0].mxu0
        %v600 = vpop.f32.mrb[0].mxu0
        %v601 = vadd.f32 %v504, %v600
        %v602 = vpop.f32.mrb[0].mxu0
        %603 = vmatprep.mubr.bf16.mxu0 0
        %604 = vmatmul.mubr.bf16.gmra.mrb[0].mxu0 %v255
        %v605 = vpop.f32.mrb[0].mxu0
        %v606 = vadd.f32 %v509, %v605
        %v607 = vpop.f32.mrb[0].mxu0
        %v608 = vpop.f32.mrb[0].mxu0
        %v609 = vadd.f32 %v512, %v608
        %v610 = vpop.f32.mrb[0].mxu0
        %611 = vmatprep.mubr.bf16.mxu0 0
        %612 = vmatmul.mubr.bf16.gmra.mrb[0].mxu0 %v258
        %v613 = vpop.f32.mrb[0].mxu0
        %v614 = vadd.f32 %v517, %v613
        %v615 = vpop.f32.mrb[0].mxu0
        %v616 = vpop.f32.mrb[0].mxu0
        %v617 = vadd.f32 %v520, %v616
        %v618 = vpop.f32.mrb[0].mxu0
        %619 = vmatprep.mubr.bf16.mxu0 0
        %620 = vmatmul.mubr.bf16.gmra.mrb[0].mxu0 %v261
        %v621 = vpop.f32.mrb[0].mxu0
        %v622 = vadd.f32 %v525, %v621
        %v623 = vpop.f32.mrb[0].mxu0
        %v624 = vpop.f32.mrb[0].mxu0
        %v625 = vadd.f32 %v528, %v624
        %v626 = vpop.f32.mrb[0].mxu0
        %627 = vmatprep.mubr.bf16.mxu0 0
        %628 = vmatmul.mubr.bf16.gmra.mrb[0].mxu0 %v264
        %v629 = vpop.f32.mrb[0].mxu0
        %v630 = vadd.f32 %v533, %v629
        %v631 = vpop.f32.mrb[0].mxu0
        %v632 = vpop.f32.mrb[0].mxu0
        %v633 = vadd.f32 %v536, %v632
        %v634 = vpop.f32.mrb[0].mxu0
        %635 = vmatprep.mubr.bf16.mxu0 0
        %636 = vmatmul.mubr.bf16.gmra.mrb[0].mxu0 %v267
        %v637 = vpop.f32.mrb[0].mxu0
        %v638 = vadd.f32 %v541, %v637
        %v639 = vpop.f32.mrb[0].mxu0
        %v640 = vpop.f32.mrb[0].mxu0
        %v641 = vadd.f32 %v544, %v640
        %v642 = vpop.f32.mrb[0].mxu0
        %643 = vmatprep.mubr.bf16.mxu0 0
        %644 = vmatmul.mubr.bf16.gmra.mrb[0].mxu0 %v270
        %v645 = vpop.f32.mrb[0].mxu0
        %v646 = vadd.f32 %v549, %v645
        %v647 = vpop.f32.mrb[0].mxu0
        %v648 = vpop.f32.mrb[0].mxu0
        %v649 = vadd.f32 %v552, %v648
        %v650 = vpop.f32.mrb[0].mxu0
        %651 = vmatprep.mubr.bf16.mxu0 0
        %652 = vmatmul.mubr.bf16.gmra.mrb[0].mxu0 %v273
        %v653 = vpop.f32.mrb[0].mxu0
        %v654 = vadd.f32 %v557, %v653
        %v655 = vpop.f32.mrb[0].mxu0
        %v656 = vpop.f32.mrb[0].mxu0
        %v657 = vadd.f32 %v560, %v656
        %v658 = vpop.f32.mrb[0].mxu0
        %659 = vdwg.mxu0
        %660 = vst [vmem:[%s198] sm:$0xff] %v598
        %661 = vst [vmem:[%s198 + $0x8] sm:$0xff] %v601
        %662 = vst [vmem:[%s198 + $0x10] sm:$0xff] %v606
        %663 = vst [vmem:[%s198 + $0x18] sm:$0xff] %v609
        %664 = vst [vmem:[%s198 + $0x20] sm:$0xff] %v614
        %665 = vst [vmem:[%s198 + $0x28] sm:$0xff] %v617
        %666 = vst [vmem:[%s198 + $0x30] sm:$0xff] %v622
        %667 = vst [vmem:[%s198 + $0x38] sm:$0xff] %v625
        %668 = vst [vmem:[%s198 + $0x40] sm:$0xff] %v630
        %669 = vst [vmem:[%s198 + $0x48] sm:$0xff] %v633
        %670 = vst [vmem:[%s198 + $0x50] sm:$0xff] %v638
        %671 = vst [vmem:[%s198 + $0x58] sm:$0xff] %v641
        %672 = vst [vmem:[%s198 + $0x60] sm:$0xff] %v646
        %673 = vst [vmem:[%s198 + $0x68] sm:$0xff] %v649
        %674 = vst [vmem:[%s198 + $0x70] sm:$0xff] %v654
        %675 = vst [vmem:[%s198 + $0x78] sm:$0xff] %v657
        %s676 = sand.u32 %s94, 1
        %s677 = scalar_lea.sflag [#allocation4], %s676
        %s678 = sand.u32 %s94, 1
        %s679 = smul.addr %s678, 128
        %s680 = scalar_lea.vmem [#allocation7], %s679
        // Predicated region
        $region37: #{tpu_custom_call.1} parent=27 // pred_check
          %p681 = pneg %p104
        $region38: #{tpu_custom_call.1} parent=27 // pred_check_branch
          %683 = sbr.rel (%p681) target = $region40
        $region39: #{tpu_custom_call.1} parent=27 // pred_region
          %s684 = smul.u32 16, %s24
          %s686 = ssub.s32 2048, 2048
          %687 = vsyncadd %s677, %s686
          %s688 = sadd.s32 %s25, %s684
          %s689 = smul.addr %s688, 128
          %s690 = scalar_lea.hbm %s2, %s689
          %s691 = sshll.u32 %s680, 4
          %s692 = int_to_ptr.vmem [resolvable:$true] %s691
          %697 = dma.vmem_to_hbm [thread:$0]  %s692, 2048, %s690, %s677, 128, 128, 8
        $region40: #{tpu_custom_call.1} parent=27 // pred_fallthru
          _
      $region28: #{tpu_custom_call.1} parent=5 // pred_fallthru
        _
      %p698 = scmp.le.s32.totalorder 2, %s15
      // Predicated region
      $region41: #{tpu_custom_call.1} parent=5 // pred_check
        %p699 = pneg %p698
      $region42: #{tpu_custom_call.1} parent=5 // pred_check_branch
        %701 = sbr.rel (%p699) target = $region44
      $region43: #{tpu_custom_call.1} parent=5 // pred_region
        %s702 = ssub.s32 %s15, 2
        // Predicated region
        $region45: #{tpu_custom_call.1} parent=43 // pred_check
          %p703 = pneg %p110
        $region46: #{tpu_custom_call.1} parent=43 // pred_check_branch
          %705 = sbr.rel (%p703) target = $region48
        $region47: #{tpu_custom_call.1} parent=43 // pred_region
          %s706 = sand.u32 %s95, 1
          %s707 = scalar_lea.sflag [#allocation4], %s706
          %s708 = sand.u32 %s95, 1
          %s709 = smul.addr %s708, 128
          %s710 = scalar_lea.vmem [#allocation7], %s709
          %711 = dma.done %s707, 2048
        $region48: #{tpu_custom_call.1} parent=43 // pred_fallthru
          _
      $region44: #{tpu_custom_call.1} parent=5 // pred_fallthru
        _
    $region6: #{tpu_custom_call.1} parent=1 // loop_footer
      %s19 = sadd.s32 1, %s15
    $region7: #{tpu_custom_call.1} parent=1 // loop_footer_branch
      %14 = sbr.rel target = $region3
    $region8: #{tpu_custom_call.1} parent=1 // loop_exit
      _
    %712 = vsyncpa [#allocation3], 1
    %s713 = scalar_lea.sflag [#allocation3], 1
    %714 = vsyncpa %s713, 1
    %715 = vsyncpa [#allocation6], 1
    %716 = vsyncpa [#allocation4], 1
    %s717 = scalar_lea.sflag [#allocation4], 1
    %718 = vsyncpa %s717, 1

</llo_original>
